<compile_context>
chip_gen: v5e
topology: v5e:2x2
jax: 0.10.0
libtpu: 0.0.40
codegen_flags: <defaults>
</compile_context>

<pallas_src>
import jax
import jax.numpy as jnp
from jax.experimental import pallas as pl
from jax.experimental.pallas import tpu as pltpu


def _channel_attn_kernel(x_ref, w1_ref, b1_ref, w2_ref, b2_ref, o_ref):
    """One grid step processes a (Bb, C, T) slab of batch elements."""
    x = x_ref[...]                                   # (Bb, C, T) in x.dtype
    xf = x.astype(jnp.float32)                       # upcast before accumulation
    bb = xf.shape[0]
    inv_t = 1.0 / xf.shape[-1]

    # Pooling: lane-axis reductions (XLU), once per block, in f32.
    avg = jnp.sum(xf, axis=-1) * inv_t               # (Bb, C)
    mx = jnp.max(xf, axis=-1)                        # (Bb, C)

    # Fused FC over both pooled branches: one W1 matmul, one ReLU, one W2
    # matmul, one sigmoid for the whole block (2*Bb rows at once). All of this
    # hides under the slab DMA on every TPU generation.
    p = jnp.concatenate([avg, mx], axis=0)           # (2*Bb, C)
    h = jnp.dot(p, w1_ref[...],
                preferred_element_type=jnp.float32) + b1_ref[...]   # (2*Bb, H)
    h = jnp.maximum(h, 0.0)                                          # ReLU
    a = jnp.dot(h, w2_ref[...],
                preferred_element_type=jnp.float32) + b2_ref[...]   # (2*Bb, C)
    a = jax.nn.sigmoid(a)
    attn = a[:bb, :] + a[bb:, :]                     # (Bb, C) f32

    # Broadcast-scale the resident slab; single full-T store per row.
    o_ref[...] = (xf * attn[:, :, None]).astype(o_ref.dtype)


def _num_tensorcores_per_device():
    """Best-effort count of TensorCores behind one JAX device.

    Megacore chips (v4 / v5p / v7x) expose 2 TensorCores per device that
    `dimension_semantics=("parallel",)` shards over; v5e / v6e expose 1.
    """
    try:
        kind = jax.devices()[0].device_kind.lower()
    except Exception:  # pragma: no cover - defensive
        return 1
    for tag in ("v4", "v5p", "v7", "7x"):
        if tag in kind:
            return 2
    return 1


def _pick_batch_block(B, C, T, elt_bytes, num_cores):
    """Pick Bb so the (Bb, C, T) slab is a few MiB (HBM-roofline friendly).

    Only chips with 2 TensorCores per device get the ">=2 grid steps" clamp,
    and there the step count is nudged to be even so neither core idles.
    """
    target_bytes = (8 << 20) if num_cores >= 2 else (4 << 20)
    per_batch = max(1, C * T * elt_bytes)
    bb = max(1, min(B, target_bytes // per_batch))
    if num_cores >= 2 and B >= 2:
        bb = min(bb, (B + 1) // 2)                   # >= 2 steps for the 2 TCs
        # Prefer an even step count (bounded search; accept odd if not found).
        for cand in range(bb, max(0, bb - 8), -1):
            if pl.cdiv(B, cand) % 2 == 0:
                bb = cand
                break
    return bb


def multi_head_channel_attention(x, w1, b1, w2, b2, *, block_batch=None):
    """x: (B, C, T) f32/bf16; w1: (C, H); b1: (1, H); w2: (H, C); b2: (1, C)."""
    B, C, T = x.shape
    H = w1.shape[1]
    elt_bytes = jnp.dtype(x.dtype).itemsize
    num_cores = _num_tensorcores_per_device()
    bb = _pick_batch_block(B, C, T, elt_bytes, num_cores)
    if block_batch is not None:                      # test/tuning override
        bb = max(1, min(int(block_batch), B))

    # Ragged last block is fine: the pooled-MLP is row-independent, so garbage
    # tail rows only scale their own out-of-bounds (dropped) output rows.
    grid_len = pl.cdiv(B, bb)
    block_bytes = bb * C * T * elt_bytes

    # Deepen input pipelining only when per-step DMA is tiny and there are
    # enough steps to pipeline; with multi-MiB blocks depth-2 saturates HBM.
    use_deep = (block_bytes < (512 << 10)) and (grid_len > 2)
    if use_deep:
        x_in_spec = pl.BlockSpec((bb, C, T), lambda b: (b, 0, 0),
                                 pipeline_mode=pl.Buffered(3))
    else:
        x_in_spec = pl.BlockSpec((bb, C, T), lambda b: (b, 0, 0))

    # VMEM budget derived from the block size: buffered in + double-buffered
    # out blocks, weights, and slack.  With the 4-8 MiB block target this stays
    # ~20-36 MiB, safe under v7x's 64 MiB and the 128 MiB of v5e/v6e.
    in_bufs = 3 if use_deep else 2
    weights_bytes = 4 * (C * H + H + H * C + C)
    vmem_needed = (in_bufs + 2) * block_bytes + 4 * weights_bytes + (2 << 20)
    vmem_limit = int(max(vmem_needed, 16 << 20))

    # NOTE: the block covers the full T, so T that is not a multiple of 128 is
    # still correct; it just pays masked partial stores on the last vreg of
    # each (b, c) row.  Pad T externally if lane-dense stores matter.
    # TODO(synk): if a single (1, C, T) slab ever exceeds the VMEM budget
    # (huge T, ~1e5+ samples; hit first on v7x's 64 MiB), fall back to a
    # T-tiled two-phase variant (pool pass + scale pass, ~1.5x HBM traffic);
    # prefer raising vmem_limit toward the generation's VMEM first.
    return pl.pallas_call(
        _channel_attn_kernel,
        out_shape=jax.ShapeDtypeStruct((B, C, T), x.dtype),
        grid_spec=pltpu.PrefetchScalarGridSpec(
            num_scalar_prefetch=0,
            grid=(grid_len,),
            in_specs=[
                x_in_spec,
                pl.BlockSpec((C, H), lambda b: (0, 0)),
                pl.BlockSpec((1, H), lambda b: (0, 0)),
                pl.BlockSpec((H, C), lambda b: (0, 0)),
                pl.BlockSpec((1, C), lambda b: (0, 0)),
            ],
            out_specs=pl.BlockSpec((bb, C, T), lambda b: (b, 0, 0)),
        ),
        compiler_params=pltpu.CompilerParams(
            dimension_semantics=("parallel",),
            vmem_limit_bytes=vmem_limit,
        ),
    )(x, w1, b1, w2, b2)


def _reference(x, w1, b1, w2, b2):
    avg = jnp.mean(x, axis=-1)
    mx = jnp.max(x, axis=-1)

    def fc(p):
        h = jnp.maximum(p @ w1 + b1, 0.0)
        return jax.nn.sigmoid(h @ w2 + b2)

    attn = fc(avg) + fc(mx)
    return x * attn[..., None]


def _run_case(key, B, C, T, reduction, dtype=jnp.float32, block_batch=None):
    H = max(1, C // reduction)
    kx, k1, k2, k3, k4 = jax.random.split(key, 5)
    x = jax.random.normal(kx, (B, C, T), dtype=jnp.float32).astype(dtype)
    # nn.Linear(C,H) / nn.Linear(H,C) weights, stored pre-transposed so the
    # kernel computes p @ W + b directly.
    w1 = jax.random.normal(k1, (C, H), dtype=jnp.float32) * 0.2
    b1 = jax.random.normal(k2, (1, H), dtype=jnp.float32) * 0.1
    w2 = jax.random.normal(k3, (H, C), dtype=jnp.float32) * 0.2
    b2 = jax.random.normal(k4, (1, C), dtype=jnp.float32) * 0.1

    out = jax.block_until_ready(
        multi_head_channel_attention(x, w1, b1, w2, b2, block_batch=block_batch))
    ref = _reference(x.astype(jnp.float32), w1, b1, w2, b2)
    if dtype == jnp.float32:
        atol, rtol = 1e-5, 1e-5
    else:  # bf16 I/O: only the final store is rounded; compute stays in f32.
        atol, rtol = 5e-2, 5e-2
    assert out.dtype == jnp.dtype(dtype)
    assert jnp.allclose(out.astype(jnp.float32), ref, atol=atol, rtol=rtol), (
        f"mismatch vs reference for shape {(B, C, T)} dtype {jnp.dtype(dtype)}")


if __name__ == "__main__":
    key = jax.random.PRNGKey(0)
    k0, k1, k2, k3 = jax.random.split(key, 4)
    # Small shapes consistent with the module (B, num_channels, T), reduction=4.
    _run_case(k0, B=2, C=16, T=128, reduction=4)                      # baseline
    _run_case(k1, B=8, C=16, T=256, reduction=4)                      # batched path
    _run_case(k2, B=3, C=16, T=128, reduction=4, block_batch=2)       # ragged grid
    _run_case(k3, B=4, C=16, T=128, reduction=4, dtype=jnp.bfloat16)  # bf16 I/O
    print("KERNEL_OK")
</pallas_src>

<mosaic_0001>
module attributes {stable_mosaic.version = 11 : i64} {
  func.func @_channel_attn_kernel(%arg0: i32, %arg1: memref<2x16x128xf32, #tpu.memory_space<vmem>>, %arg2: memref<16x4xf32, #tpu.memory_space<vmem>>, %arg3: memref<1x4xf32, #tpu.memory_space<vmem>>, %arg4: memref<4x16xf32, #tpu.memory_space<vmem>>, %arg5: memref<1x16xf32, #tpu.memory_space<vmem>>, %arg6: memref<2x16x128xf32, #tpu.memory_space<vmem>>) attributes {dimension_semantics = [#tpu.dimension_semantics<parallel>], iteration_bounds = array<i64: 1>, scalar_prefetch = 0 : i64, scratch_operands = 0 : i64, tpu.core_type = #tpu.core_type<tc>, window_params = [{transform_indices = @transform_0, window_bounds = array<i64: 2, 16, 128>}, {pipeline_mode = #tpu.pipeline_mode<synchronous>, transform_indices = @transform_1, window_bounds = array<i64: 16, 4>}, {pipeline_mode = #tpu.pipeline_mode<synchronous>, transform_indices = @transform_2, window_bounds = array<i64: 1, 4>}, {pipeline_mode = #tpu.pipeline_mode<synchronous>, transform_indices = @transform_3, window_bounds = array<i64: 4, 16>}, {pipeline_mode = #tpu.pipeline_mode<synchronous>, transform_indices = @transform_4, window_bounds = array<i64: 1, 16>}, {transform_indices = @transform_5, window_bounds = array<i64: 2, 16, 128>}]} {
    %c0 = arith.constant 0 : index
    %c0_0 = arith.constant 0 : index
    %c0_1 = arith.constant 0 : index
    %0 = vector.load %arg1[%c0, %c0_0, %c0_1] : memref<2x16x128xf32, #tpu.memory_space<vmem>>, vector<2x16x128xf32>
    %cst = arith.constant dense<0.000000e+00> : vector<2x16xf32>
    %1 = vector.multi_reduction <add>, %0, %cst [2] : vector<2x16x128xf32> to vector<2x16xf32>
    %cst_2 = arith.constant 7.812500e-03 : f32
    %2 = vector.broadcast %cst_2 : f32 to vector<2x16xf32>
    %3 = arith.mulf %1, %2 : vector<2x16xf32>
    %cst_3 = arith.constant dense<0xFF800000> : vector<2x16xf32>
    %4 = vector.multi_reduction <maximumf>, %0, %cst_3 [2] : vector<2x16x128xf32> to vector<2x16xf32>
    %5 = tpu.concatenate %3, %4 in 0 : vector<2x16xf32>, vector<2x16xf32> -> vector<4x16xf32>
    %c0_4 = arith.constant 0 : index
    %c0_5 = arith.constant 0 : index
    %6 = vector.load %arg2[%c0_4, %c0_5] : memref<16x4xf32, #tpu.memory_space<vmem>>, vector<16x4xf32>
    %cst_6 = arith.constant dense<0.000000e+00> : vector<4x4xf32>
    %7 = tpu.matmul %5, %6, %cst_6 {dimension_numbers = #tpu.dot_dimension_numbers<[1], [0], [0], [1], [0, 0, 1, 1], [], []>} : vector<4x16xf32>, vector<16x4xf32>, vector<4x4xf32> -> vector<4x4xf32>
    %c0_7 = arith.constant 0 : index
    %c0_8 = arith.constant 0 : index
    %8 = vector.load %arg3[%c0_7, %c0_8] : memref<1x4xf32, #tpu.memory_space<vmem>>, vector<1x4xf32>
    %9 = vector.broadcast %8 : vector<1x4xf32> to vector<4x4xf32>
    %10 = arith.addf %7, %9 : vector<4x4xf32>
    %cst_9 = arith.constant 0.000000e+00 : f32
    %11 = vector.broadcast %cst_9 : f32 to vector<4x4xf32>
    %12 = arith.maximumf %10, %11 : vector<4x4xf32>
    %c0_10 = arith.constant 0 : index
    %c0_11 = arith.constant 0 : index
    %13 = vector.load %arg4[%c0_10, %c0_11] : memref<4x16xf32, #tpu.memory_space<vmem>>, vector<4x16xf32>
    %cst_12 = arith.constant dense<0.000000e+00> : vector<4x16xf32>
    %14 = tpu.matmul %12, %13, %cst_12 {dimension_numbers = #tpu.dot_dimension_numbers<[1], [0], [0], [1], [0, 0, 1, 1], [], []>} : vector<4x4xf32>, vector<4x16xf32>, vector<4x16xf32> -> vector<4x16xf32>
    %c0_13 = arith.constant 0 : index
    %c0_14 = arith.constant 0 : index
    %15 = vector.load %arg5[%c0_13, %c0_14] : memref<1x16xf32, #tpu.memory_space<vmem>>, vector<1x16xf32>
    %16 = vector.broadcast %15 : vector<1x16xf32> to vector<4x16xf32>
    %17 = arith.addf %14, %16 : vector<4x16xf32>
    %18 = arith.negf %17 : vector<4x16xf32>
    %19 = math.exp %18 : vector<4x16xf32>
    %cst_15 = arith.constant 1.000000e+00 : f32
    %20 = vector.broadcast %cst_15 : f32 to vector<4x16xf32>
    %21 = arith.addf %20, %19 : vector<4x16xf32>
    %22 = arith.divf %20, %21 : vector<4x16xf32>
    %23 = vector.extract_strided_slice %22 {offsets = [0, 0], sizes = [2, 16], strides = [1, 1]} : vector<4x16xf32> to vector<2x16xf32>
    %24 = vector.extract_strided_slice %22 {offsets = [2, 0], sizes = [2, 16], strides = [1, 1]} : vector<4x16xf32> to vector<2x16xf32>
    %25 = arith.addf %23, %24 : vector<2x16xf32>
    %26 = vector.shape_cast %25 : vector<2x16xf32> to vector<2x16x1xf32>
    %27 = vector.broadcast %26 : vector<2x16x1xf32> to vector<2x16x128xf32>
    %28 = arith.mulf %0, %27 : vector<2x16x128xf32>
    %c0_16 = arith.constant 0 : index
    %c0_17 = arith.constant 0 : index
    %c0_18 = arith.constant 0 : index
    %29 = vector.load %arg6[%c0_16, %c0_17, %c0_18] : memref<2x16x128xf32, #tpu.memory_space<vmem>>, vector<2x16x128xf32>
    tpu.vector_store %arg6[%c0_16, %c0_17, %c0_18], %28 {strides = array<i32>} : memref<2x16x128xf32, #tpu.memory_space<vmem>>, vector<2x16x128xf32>,
    return
  }
  func.func @transform_0(%arg0: i32) -> (i32, i32, i32) {
    %c0_i32 = arith.constant 0 : i32
    %c0_i32_0 = arith.constant 0 : i32
    %c0_i32_1 = arith.constant 0 : i32
    return %arg0, %c0_i32, %c0_i32_0 : i32, i32, i32
  }
  func.func @transform_1(%arg0: i32) -> (i32, i32) {
    %c0_i32 = arith.constant 0 : i32
    %c0_i32_0 = arith.constant 0 : i32
    %c0_i32_1 = arith.constant 0 : i32
    return %c0_i32, %c0_i32_0 : i32, i32
  }
  func.func @transform_2(%arg0: i32) -> (i32, i32) {
    %c0_i32 = arith.constant 0 : i32
    %c0_i32_0 = arith.constant 0 : i32
    %c0_i32_1 = arith.constant 0 : i32
    return %c0_i32, %c0_i32_0 : i32, i32
  }
  func.func @transform_3(%arg0: i32) -> (i32, i32) {
    %c0_i32 = arith.constant 0 : i32
    %c0_i32_0 = arith.constant 0 : i32
    %c0_i32_1 = arith.constant 0 : i32
    return %c0_i32, %c0_i32_0 : i32, i32
  }
  func.func @transform_4(%arg0: i32) -> (i32, i32) {
    %c0_i32 = arith.constant 0 : i32
    %c0_i32_0 = arith.constant 0 : i32
    %c0_i32_1 = arith.constant 0 : i32
    return %c0_i32, %c0_i32_0 : i32, i32
  }
  func.func @transform_5(%arg0: i32) -> (i32, i32, i32) {
    %c0_i32 = arith.constant 0 : i32
    %c0_i32_0 = arith.constant 0 : i32
    %c0_i32_1 = arith.constant 0 : i32
    return %arg0, %c0_i32, %c0_i32_0 : i32, i32, i32
  }
}

</mosaic_0001>

<llo_original>
// kernel: tpu_custom_call.1
$region0: #{tpu_custom_call.1}
  #allocation0 [shape = 'u32[]', space=smem, size = 0x4, offset = 0x4, fixed_abs, tag = 'smem constant byte address 0x4 - core index']
  #allocation1 [shape = 'u32[72,128]{1,0:T(1,128)}', space=vmem, size = 0x9000, scoped, tag = 'internal scratch']
  %s0 = inlined_call_operand.hbm [shape: f32[2,16,128], index: 0, kind: input, shape index: {}]
  %s1 = inlined_call_operand.vmem [shape: f32[16,4], index: 1, kind: input, shape index: {}]
  %s2 = inlined_call_operand.vmem [shape: f32[1,4], index: 2, kind: input, shape index: {}]
  %s3 = inlined_call_operand.vmem [shape: f32[4,16], index: 3, kind: input, shape index: {}]
  %s4 = inlined_call_operand.vmem [shape: f32[1,16], index: 4, kind: input, shape index: {}]
  %s5 = inlined_call_operand.hbm [shape: f32[2,16,128], index: 5, kind: output, shape index: {}]
  %s6 = sld [smem:[#allocation0]]
  $region34: #{tpu_custom_call.1} parent=0
    _
  %s8 = ssub.s32 1, %s6
  %s9 = scalar_select 0, %s8, %s6
  $region1: #{tpu_custom_call.1} parent=0
    #allocation2 [shape = 'u8[16384]{0}', space=vmem, size = 0x4000, scoped, tag = 'input window, operand 0, single buffered']
    #allocation3 [shape = 's32[1]{0}', space=sflag, size = 0x4, scoped, tag = 'scoped memory for tpu_custom_call.1']
    #allocation4 [shape = 's32[1]{0}', space=sflag, size = 0x4, scoped, tag = 'scoped memory for tpu_custom_call.1']
    #allocation5 [shape = 'u8[16384]{0}', space=vmem, size = 0x4000, scoped, tag = 'output window, operand 0, single buffered']
    %10 = vsyncpa [#allocation3], 0
    %11 = vsyncpa [#allocation4], 0
    // Predicated region
    $region2: #{tpu_custom_call.1} parent=1 // pred_check
      _
    $region3: #{tpu_custom_call.1} parent=1 // pred_check_branch
      %13 = sbr.rel (0) target = $region5
    $region4: #{tpu_custom_call.1} parent=1 // pred_region
      %15 = vsyncadd [#allocation3], 0
      %s16 = sshll.u32 %s0, 4
      %s17 = int_to_ptr.hbm [resolvable:$true] %s16
      %s18 = sshll.u32 [#allocation2], 4
      %s19 = int_to_ptr.vmem [resolvable:$true] %s18
      %24 = dma.hbm_to_vmem [thread:$0]  %s17, 512, %s19, [#allocation3], 128, 128, 8
    $region5: #{tpu_custom_call.1} parent=1 // pred_fallthru
      _
    // Predicated region
    $region6: #{tpu_custom_call.1} parent=1 // pred_check
      _
    $region7: #{tpu_custom_call.1} parent=1 // pred_check_branch
      %26 = sbr.rel (0) target = $region9
    $region8: #{tpu_custom_call.1} parent=1 // pred_region
      _
    $region9: #{tpu_custom_call.1} parent=1 // pred_fallthru
      _
    // Predicated region
    $region10: #{tpu_custom_call.1} parent=1 // pred_check
      _
    $region11: #{tpu_custom_call.1} parent=1 // pred_check_branch
      %28 = sbr.rel (0) target = $region13
    $region12: #{tpu_custom_call.1} parent=1 // pred_region
      _
    $region13: #{tpu_custom_call.1} parent=1 // pred_fallthru
      _
    // Predicated region
    $region14: #{tpu_custom_call.1} parent=1 // pred_check
      _
    $region15: #{tpu_custom_call.1} parent=1 // pred_check_branch
      %30 = sbr.rel (0) target = $region17
    $region16: #{tpu_custom_call.1} parent=1 // pred_region
      _
    $region17: #{tpu_custom_call.1} parent=1 // pred_fallthru
      _
    // Predicated region
    $region18: #{tpu_custom_call.1} parent=1 // pred_check
      _
    $region19: #{tpu_custom_call.1} parent=1 // pred_check_branch
      %32 = sbr.rel (0) target = $region21
    $region20: #{tpu_custom_call.1} parent=1 // pred_region
      _
    $region21: #{tpu_custom_call.1} parent=1 // pred_fallthru
      _
    // Predicated region
    $region22: #{tpu_custom_call.1} parent=1 // pred_check
      _
    $region23: #{tpu_custom_call.1} parent=1 // pred_check_branch
      %34 = sbr.rel (0) target = $region25
    $region24: #{tpu_custom_call.1} parent=1 // pred_region
      %36 = dma.done [#allocation3], 512
    $region25: #{tpu_custom_call.1} parent=1 // pred_fallthru
      _
    %v37 = vld [vmem:[#allocation2] sm:$0xff]
    %v38 = vld [vmem:[#allocation2 + $0x8] sm:$0xff]
    %v39 = vld [vmem:[#allocation2 + $0x10] sm:$0xff]
    %v40 = vld [vmem:[#allocation2 + $0x18] sm:$0xff]
    %41 = vadd.xlane.f32.xlu0 %v37
    %v42 = vpop.xlane.xlu0 %41
    %43 = vadd.xlane.f32.xlu0 %v38
    %v44 = vpop.xlane.xlu0 %43
    %45 = vadd.xlane.f32.xlu0 %v39
    %v46 = vpop.xlane.xlu0 %45
    %47 = vadd.xlane.f32.xlu0 %v40
    %v48 = vpop.xlane.xlu0 %47
    %v49 = vmul.f32 %v42, 0.0078125
    %v50 = vmul.f32 %v44, 0.0078125
    %v51 = vmul.f32 %v46, 0.0078125
    %v52 = vmul.f32 %v48, 0.0078125
    %53 = vmax.xlane.f32.xlu0 %v37
    %v54 = vpop.xlane.xlu0 %53
    %55 = vmax.xlane.f32.xlu0 %v38
    %v56 = vpop.xlane.xlu0 %55
    %57 = vmax.xlane.f32.xlu0 %v39
    %v58 = vpop.xlane.xlu0 %57
    %59 = vmax.xlane.f32.xlu0 %v40
    %v60 = vpop.xlane.xlu0 %59
    %v65 = vlaneseq
    %v66 = vand.u32 %v65, 127
    %v67 = vperm.slane %v49, %v66
    %v68 = vadd.s32 %v66, 4294967288
    %v69 = vperm.slane %v50, %v68
    %vm70 = vcmask 130112
    %v71 = vsel %vm70, %v69, %v67
    %v72 = vperm.slane %v51, %v66
    %v73 = vperm.slane %v52, %v68
    %v74 = vsel %vm70, %v73, %v72
    %vm75 = vcmask 1041409
    %v76 = vsel %vm75, %v74, %v71
    %v82 = vperm.slane %v54, %v66
    %v83 = vperm.slane %v56, %v68
    %v84 = vsel %vm70, %v83, %v82
    %v85 = vperm.slane %v58, %v66
    %v86 = vperm.slane %v60, %v68
    %v87 = vsel %vm70, %v86, %v85
    %vm88 = vcmask 1043459
    %v89 = vsel %vm88, %v87, %v84
    %vm91 = vcmask 1041408
    %v92 = vsel %vm91, %v76, %v89
    %v93 = vld [vmem:[%s1] sm:$0xff]
    %v94 = vld [vmem:[%s1 + $0x8] sm:$0xff]
    %v95 = vld [vmem:[%s2] sm:$0x1]
    %v97 = vperm.slane %v95, 0
    %vm99 = vcmask 130048
    %v101 = vsel %vm99, %v92, 0
    %103 = vmatpush.msra.mxu0 0.0
    %104 = vmatpush.msra.mxu0 0.0
    %105 = vmatpush.msra.mxu0 0.0
    %106 = vmatpush.msra.mxu0 0.0
    %107 = vmatpush.msra.mxu0 0.0
    %108 = vmatpush.msra.mxu0 0.0
    %109 = vmatpush.msra.mxu0 0.0
    %110 = vmatpush.msra.mxu0 0.0
    %111 = vmatpush.msra.mxu0 0.0
    %112 = vmatpush.msra.mxu0 0.0
    %113 = vmatpush.msra.mxu0 0.0
    %114 = vmatpush.msra.mxu0 0.0
    %115 = vmatpush.msra.mxu0 0.0
    %116 = vmatpush.msra.mxu0 0.0
    %117 = vmatpush.msra.mxu0 %v94
    %118 = vmatpush.msra.mxu0 %v93
    %119 = vmatmul.f32.gmra.mxu0 %v101
    %v120 = vpop.f32.mrf.mxu0
    %v121 = vadd.f32 %v97, %v120
    %122 = vdwg.mxu0
    %v123 = vmax.f32 %v121, 0.0
    %v124 = vld [vmem:[%s3] sm:$0xf]
    %v125 = vld [vmem:[%s4] sm:$0x1]
    %v127 = vperm.slane %v125, 0
    %vm129 = vcmask 31744
    %v131 = vsel %vm129, %v123, 0
    %vm133 = vcmask 1043456
    %v135 = vsel %vm133, %v124, 0
    %137 = vmatpush.msra.mxu0 0.0
    %138 = vmatpush.msra.mxu0 0.0
    %139 = vmatpush.msra.mxu0 0.0
    %140 = vmatpush.msra.mxu0 0.0
    %141 = vmatpush.msra.mxu0 0.0
    %142 = vmatpush.msra.mxu0 0.0
    %143 = vmatpush.msra.mxu0 0.0
    %144 = vmatpush.msra.mxu0 0.0
    %145 = vmatpush.msra.mxu0 0.0
    %146 = vmatpush.msra.mxu0 0.0
    %147 = vmatpush.msra.mxu0 0.0
    %148 = vmatpush.msra.mxu0 0.0
    %149 = vmatpush.msra.mxu0 0.0
    %150 = vmatpush.msra.mxu0 0.0
    %151 = vmatpush.msra.mxu0 0.0
    %152 = vmatpush.msra.mxu0 %v135
    %153 = vmatmul.f32.gmra.mxu0 %v131
    %v154 = vpop.f32.mrf.mxu0
    %v155 = vadd.f32 %v127, %v154
    %156 = vdwg.mxu0
    %v157 = vxor.u32 %v155, 2147483648
    %v158 = vmul.f32 %v157, 1.442695
    %v159 = vpow.pop %v158
    %v160 = vadd.f32 %v159, 1.0
    %v161 = vrcp.pop %v160
    %v162 = vmul.f32 %v160, %v161
    %v163 = vsub.f32 1.0, %v162
    %v164 = vmul.f32 %v161, %v163
    %v165 = vadd.f32 %v161, %v164
    %vm166 = vweird.f32 %v160
    %vm167 = vweird.f32 %v161
    %vm168 = vmor %vm166, %vm167
    %v169 = vsel %vm168, %v161, %v165
    %v170 = vand.u32 2147483647, %v160
    %vm171 = vcmp.eq.f32.partialorder %v170, 8.507059e+37
    %v172 = vand.u32 %v160, 2147483648
    %v173 = vor.u32 1.1754944e-38, %v172
    %v174 = vsel %vm171, %v173, %v169
    %v175 = vmul.f32 1.0, %v174
    %v177 = vrot.slane %v175, 2
    %v179 = vadd.f32 %v175, %v177
    %v180 = vperm.slane %v179, 0
    %v181 = vlaneseq
    %v182 = vshrl.u32 %v181, 7
    %184 = vset.pattern.permute.xlu0 %v182
    %185 = vperm.xlu0 %184, %v180
    %v186 = vpop.permute.xlu0 %185
    %v187 = vlaneseq
    %v188 = vshrl.u32 %v187, 7
    %v189 = vadd.s32 %v188, 8
    %190 = vset.pattern.permute.xlu0 %v189
    %191 = vperm.xlu0 %190, %v180
    %v192 = vpop.permute.xlu0 %191
    %v193 = vperm.slane %v179, 1
    %v194 = vlaneseq
    %v195 = vshrl.u32 %v194, 7
    %197 = vset.pattern.permute.xlu0 %v195
    %198 = vperm.xlu0 %197, %v193
    %v199 = vpop.permute.xlu0 %198
    %v200 = vlaneseq
    %v201 = vshrl.u32 %v200, 7
    %v202 = vadd.s32 %v201, 8
    %203 = vset.pattern.permute.xlu0 %v202
    %204 = vperm.xlu0 %203, %v193
    %v205 = vpop.permute.xlu0 %204
    %v206 = vmul.f32 %v37, %v186
    %v207 = vmul.f32 %v38, %v192
    %v208 = vmul.f32 %v39, %v199
    %v209 = vmul.f32 %v40, %v205
    %210 = vst [vmem:[#allocation5] sm:$0xff] %v206
    %211 = vst [vmem:[#allocation5 + $0x8] sm:$0xff] %v207
    %212 = vst [vmem:[#allocation5 + $0x10] sm:$0xff] %v208
    %213 = vst [vmem:[#allocation5 + $0x18] sm:$0xff] %v209
    // Predicated region
    $region26: #{tpu_custom_call.1} parent=1 // pred_check
      _
    $region27: #{tpu_custom_call.1} parent=1 // pred_check_branch
      %215 = sbr.rel (0) target = $region29
    $region28: #{tpu_custom_call.1} parent=1 // pred_region
      %217 = vsyncadd [#allocation4], 0
      %s218 = sshll.u32 [#allocation5], 4
      %s219 = int_to_ptr.vmem [resolvable:$true] %s218
      %s220 = sshll.u32 %s5, 4
      %s221 = int_to_ptr.hbm [resolvable:$true] %s220
      %226 = dma.vmem_to_hbm [thread:$0]  %s219, 512, %s221, [#allocation4], 128, 128, 8
    $region29: #{tpu_custom_call.1} parent=1 // pred_fallthru
      _
    // Predicated region
    $region30: #{tpu_custom_call.1} parent=1 // pred_check
      _
    $region31: #{tpu_custom_call.1} parent=1 // pred_check_branch
      %228 = sbr.rel (0) target = $region33
    $region32: #{tpu_custom_call.1} parent=1 // pred_region
      %230 = dma.done [#allocation4], 512
    $region33: #{tpu_custom_call.1} parent=1 // pred_fallthru
      _
    %231 = vsyncpa [#allocation3], 1
    %232 = vsyncpa [#allocation4], 1

</llo_original>
